<compile_context>
chip_gen: v7x
topology: tpu7x:2x2x1
jax: 0.10.0
libtpu: 0.0.40
codegen_flags: <defaults>
</compile_context>

<pallas_src>
import functools

import jax
import jax.numpy as jnp
from jax.experimental import pallas as pl
from jax.experimental.pallas import tpu as pltpu

BN_EPS = 1e-5
LANES = 128


def _round_up(n, m):
    return (n + m - 1) // m * m


def _shift_down(a):
    """result[:, i, :] = a[:, i-1, :]; row 0 is zero (post-activation conv pad)."""
    zero = jnp.zeros_like(a[:, :1, :])
    return jnp.concatenate([zero, a[:, :-1, :]], axis=1)


def _shift_up(a):
    """result[:, i, :] = a[:, i+1, :]; last row is zero."""
    zero = jnp.zeros_like(a[:, :1, :])
    return jnp.concatenate([a[:, 1:, :], zero], axis=1)


# ---------------------------------------------------------------------------
# Fused PreActBlock kernel
# ---------------------------------------------------------------------------
def _make_block_kernel(B, Lo, Cin_p, Cout_p, stride, has_sc, mask_last_p):
    def kernel(*refs):
        if stride == 1:
            (x_c_ref, s1_ref, b1_ref, w1_ref,
             s2_ref, b2_ref, w2_ref, o_ref) = refs
            x_p_ref = None
        else:
            (x_c_ref, x_p_ref, s1_ref, b1_ref, w1_ref,
             s2_ref, b2_ref, w2_ref, o_ref) = refs

        s1 = s1_ref[...]            # [1, 1, Cin_p]  folded BN1 scale
        b1 = b1_ref[...]            # [1, 1, Cin_p]  folded BN1 bias
        s2 = s2_ref[...]            # [1, 1, Cout_p]
        b2 = b2_ref[...]

        # ---- BN1 (folded inference affine) + ReLU; f32 math, single bf16 cast
        x_c = x_c_ref[...]                                       # [B, Lo, Cin_p]
        a1_c = jnp.maximum(x_c * s1 + b1, 0.0).astype(jnp.bfloat16)
        if stride == 1:
            a1_p = _shift_up(a1_c)                               # tap +1
            a1_m = _shift_down(a1_c)                             # tap -1
        else:
            a1_p = jnp.maximum(x_p_ref[...] * s1 + b1, 0.0).astype(jnp.bfloat16)
            if mask_last_p:
                # last +1 tap falls in the conv padding -> zero post-activation
                row = jax.lax.broadcasted_iota(jnp.int32, a1_p.shape, 1)
                a1_p = jnp.where(row == Lo - 1, jnp.zeros_like(a1_p), a1_p)
            a1_m = _shift_down(a1_p)

        # ---- conv1 (k=3, stride=s, pad=1): one im2col MXU matmul ------------
        im1 = jnp.concatenate([a1_m, a1_c, a1_p], axis=-1)       # [B, Lo, 3Cin_p]
        im1 = im1.reshape(B * Lo, 3 * Cin_p)
        c1 = jnp.dot(im1, w1_ref[...],
                     preferred_element_type=jnp.float32)         # [B*Lo, Cout_p]
        c1 = c1.reshape(B, Lo, Cout_p)

        # ---- BN2 + ReLU fused into the conv1 epilogue -----------------------
        a2_c = jnp.maximum(c1 * s2 + b2, 0.0).astype(jnp.bfloat16)
        a2_p = _shift_up(a2_c)
        a2_m = _shift_down(a2_c)

        # ---- conv2 (k=3, stride=1, pad=1), shortcut 1x1 conv fused as extra K
        if has_sc:
            im2 = jnp.concatenate([a2_m, a2_c, a2_p, a1_c], axis=-1)
            im2 = im2.reshape(B * Lo, 3 * Cout_p + Cin_p)
        else:
            im2 = jnp.concatenate([a2_m, a2_c, a2_p], axis=-1)
            im2 = im2.reshape(B * Lo, 3 * Cout_p)
        c2 = jnp.dot(im2, w2_ref[...],
                     preferred_element_type=jnp.float32)         # [B*Lo, Cout_p]

        if has_sc:
            out = c2                               # shortcut already folded in
        else:
            out = c2 + x_c.reshape(B * Lo, Cout_p)  # identity shortcut (pre-BN x)
        o_ref[...] = out.reshape(B, Lo, Cout_p)

    return kernel


@functools.partial(jax.jit, static_argnames=("stride",))
def preact_block_forward(x_ncl, params, *, stride):
    """PreActBlock forward. x_ncl: [B, Cin, L] (PyTorch layout) -> [B, Cout, Lo]."""
    B, Cin, L = x_ncl.shape
    Cout = params["conv1_w"].shape[-1]
    Lo = (L - 1) // stride + 1
    has_sc = "sc_w" in params

    Cin_p = _round_up(Cin, LANES)
    Cout_p = _round_up(Cout, LANES)

    # NLC layout (channels on the 128-lane axis), zero-padded to lane-dense width.
    x = jnp.transpose(x_ncl, (0, 2, 1)).astype(jnp.float32)
    x = jnp.pad(x, ((0, 0), (0, 0), (0, Cin_p - Cin)))

    # Stride handled in the wrapper (cheap strided slices on HBM arrays) so the
    # kernel never needs strided ref reads.
    x_c = x[:, ::stride, :]                                      # rows i*stride
    inputs = [x_c]
    mask_last_p = False
    if stride != 1:
        x_p = x[:, 1::stride, :]                                 # rows i*stride + 1
        if x_p.shape[1] < Lo:                                    # odd-L tail row
            x_p = jnp.pad(x_p, ((0, 0), (0, Lo - x_p.shape[1]), (0, 0)))
            mask_last_p = True
        inputs.append(x_p)

    def pad_vec(v, c, cp):
        return jnp.pad(jnp.reshape(v, (-1,)), (0, cp - c)).reshape(1, 1, cp)

    s1 = pad_vec(params["bn1_scale"], Cin, Cin_p)
    b1 = pad_vec(params["bn1_bias"], Cin, Cin_p)
    s2 = pad_vec(params["bn2_scale"], Cout, Cout_p)
    b2 = pad_vec(params["bn2_bias"], Cout, Cout_p)

    # Conv weights: pad channels to 128-lane multiples, flatten taps along K.
    w1 = jnp.pad(params["conv1_w"],
                 ((0, 0), (0, Cin_p - Cin), (0, Cout_p - Cout)))
    w1 = w1.reshape(3 * Cin_p, Cout_p).astype(jnp.bfloat16)
    w2 = jnp.pad(params["conv2_w"],
                 ((0, 0), (0, Cout_p - Cout), (0, Cout_p - Cout)))
    w2 = w2.reshape(3 * Cout_p, Cout_p)
    if has_sc:
        sc = jnp.pad(params["sc_w"], ((0, Cin_p - Cin), (0, Cout_p - Cout)))
        w2 = jnp.concatenate([w2, sc], axis=0)       # fuse 1x1 shortcut into K
    w2 = w2.astype(jnp.bfloat16)

    inputs += [s1, b1, w1, s2, b2, w2]

    vmem = pl.BlockSpec(memory_space=pltpu.MemorySpace.VMEM)
    out = pl.pallas_call(
        _make_block_kernel(B, Lo, Cin_p, Cout_p, stride, has_sc, mask_last_p),
        out_shape=jax.ShapeDtypeStruct((B, Lo, Cout_p), jnp.float32),
        in_specs=[vmem] * len(inputs),
        out_specs=vmem,
    )(*inputs)
    out = out[:, :, :Cout]                                       # drop lane padding
    return jnp.transpose(out, (0, 2, 1))                         # back to NCL


# ---------------------------------------------------------------------------
# Parameter construction (BN running stats folded into per-channel affine)
# ---------------------------------------------------------------------------
def _conv_w(key, k, cin, cout):
    std = (2.0 / (cin * k)) ** 0.5
    return jax.random.normal(key, (k, cin, cout), jnp.float32) * std


def _bn_affine(key, c):
    k1, k2, k3, k4 = jax.random.split(key, 4)
    gamma = jax.random.uniform(k1, (c,), jnp.float32, 0.5, 1.5)
    beta = jax.random.normal(k2, (c,), jnp.float32) * 0.1
    mean = jax.random.normal(k3, (c,), jnp.float32) * 0.1
    var = jax.random.uniform(k4, (c,), jnp.float32, 0.5, 1.5)
    scale = gamma / jnp.sqrt(var + BN_EPS)
    bias = beta - mean * scale
    return scale[None, :], bias[None, :]


def init_block_params(key, in_planes, planes, stride):
    ks = jax.random.split(key, 5)
    p = {}
    p["bn1_scale"], p["bn1_bias"] = _bn_affine(ks[0], in_planes)
    p["conv1_w"] = _conv_w(ks[1], 3, in_planes, planes)
    p["bn2_scale"], p["bn2_bias"] = _bn_affine(ks[2], planes)
    p["conv2_w"] = _conv_w(ks[3], 3, planes, planes)
    if stride != 1 or in_planes != planes:                       # expansion = 1
        p["sc_w"] = _conv_w(ks[4], 1, in_planes, planes)[0]      # [Cin, Cout]
    return p


# ---------------------------------------------------------------------------
# Pure-JAX reference (f32) for a numerical sanity check
# ---------------------------------------------------------------------------
def _reference_block(x_ncl, params, stride):
    x = jnp.transpose(x_ncl, (0, 2, 1)).astype(jnp.float32)

    def conv3(a, w, s):
        B, L, _ = a.shape
        Lo = (L - 1) // s + 1
        ap = jnp.pad(a, ((0, 0), (1, 1), (0, 0)))
        out = jnp.zeros((B, Lo, w.shape[-1]), jnp.float32)
        for k in range(3):
            out = out + jnp.einsum("blc,cd->bld",
                                   ap[:, k:k + (Lo - 1) * s + 1:s, :], w[k])
        return out

    a1 = jnp.maximum(x * params["bn1_scale"] + params["bn1_bias"], 0.0)
    out = conv3(a1, params["conv1_w"], stride)
    out = jnp.maximum(out * params["bn2_scale"] + params["bn2_bias"], 0.0)
    out = conv3(out, params["conv2_w"], 1)
    if "sc_w" in params:
        shortcut = jnp.einsum("blc,cd->bld", a1[:, ::stride, :], params["sc_w"])
    else:
        shortcut = x
    return jnp.transpose(out + shortcut, (0, 2, 1))


if __name__ == "__main__":
    key = jax.random.PRNGKey(0)
    k_p1, k_p2, k_x = jax.random.split(key, 3)

    B, L = 2, 16
    x = jax.random.normal(k_x, (B, 64, L), jnp.float32)          # NCL, like nn.Conv1d input

    # Identity-shortcut block: in_planes = planes = 64, stride = 1.
    p_id = init_block_params(k_p1, 64, 64, 1)
    y_id = preact_block_forward(x, p_id, stride=1)

    # Downsampling block: 64 -> 128 channels, stride = 2 (conv shortcut path).
    p_dn = init_block_params(k_p2, 64, 128, 2)
    y_dn = preact_block_forward(x, p_dn, stride=2)

    y_id, y_dn = jax.block_until_ready((y_id, y_dn))
    assert y_id.shape == (B, 64, L) and y_id.dtype == jnp.float32
    assert y_dn.shape == (B, 128, L // 2) and y_dn.dtype == jnp.float32

    # Numerical check vs. f32 reference (kernel uses bf16 MXU inputs, f32 accum).
    ref_id = _reference_block(x, p_id, 1)
    ref_dn = _reference_block(x, p_dn, 2)
    assert bool(jnp.allclose(y_id, ref_id, rtol=5e-2, atol=5e-2))
    assert bool(jnp.allclose(y_dn, ref_dn, rtol=5e-2, atol=5e-2))

    print("KERNEL_OK")
</pallas_src>

<mosaic_0001>
module attributes {stable_mosaic.version = 11 : i64} {
  func.func @kernel(%arg0: memref<2x16x128xf32, #tpu.memory_space<vmem>>, %arg1: memref<1x1x128xf32, #tpu.memory_space<vmem>>, %arg2: memref<1x1x128xf32, #tpu.memory_space<vmem>>, %arg3: memref<384x128xbf16, #tpu.memory_space<vmem>>, %arg4: memref<1x1x128xf32, #tpu.memory_space<vmem>>, %arg5: memref<1x1x128xf32, #tpu.memory_space<vmem>>, %arg6: memref<384x128xbf16, #tpu.memory_space<vmem>>, %arg7: memref<2x16x128xf32, #tpu.memory_space<vmem>>) attributes {dimension_semantics = [], scalar_prefetch = 0 : i64, scratch_operands = 0 : i64, tpu.core_type = #tpu.core_type<tc>} {
    %c0 = arith.constant 0 : index
    %c0_0 = arith.constant 0 : index
    %c0_1 = arith.constant 0 : index
    %0 = vector.load %arg1[%c0, %c0_0, %c0_1] : memref<1x1x128xf32, #tpu.memory_space<vmem>>, vector<1x1x128xf32>
    %c0_2 = arith.constant 0 : index
    %c0_3 = arith.constant 0 : index
    %c0_4 = arith.constant 0 : index
    %1 = vector.load %arg2[%c0_2, %c0_3, %c0_4] : memref<1x1x128xf32, #tpu.memory_space<vmem>>, vector<1x1x128xf32>
    %c0_5 = arith.constant 0 : index
    %c0_6 = arith.constant 0 : index
    %c0_7 = arith.constant 0 : index
    %2 = vector.load %arg4[%c0_5, %c0_6, %c0_7] : memref<1x1x128xf32, #tpu.memory_space<vmem>>, vector<1x1x128xf32>
    %c0_8 = arith.constant 0 : index
    %c0_9 = arith.constant 0 : index
    %c0_10 = arith.constant 0 : index
    %3 = vector.load %arg5[%c0_8, %c0_9, %c0_10] : memref<1x1x128xf32, #tpu.memory_space<vmem>>, vector<1x1x128xf32>
    %c0_11 = arith.constant 0 : index
    %c0_12 = arith.constant 0 : index
    %c0_13 = arith.constant 0 : index
    %4 = vector.load %arg0[%c0_11, %c0_12, %c0_13] : memref<2x16x128xf32, #tpu.memory_space<vmem>>, vector<2x16x128xf32>
    %5 = vector.broadcast %0 : vector<1x1x128xf32> to vector<2x16x128xf32>
    %6 = arith.mulf %4, %5 : vector<2x16x128xf32>
    %7 = vector.broadcast %1 : vector<1x1x128xf32> to vector<2x16x128xf32>
    %8 = arith.addf %6, %7 : vector<2x16x128xf32>
    %cst = arith.constant 0.000000e+00 : f32
    %9 = vector.broadcast %cst : f32 to vector<2x16x128xf32>
    %10 = arith.maximumf %8, %9 : vector<2x16x128xf32>
    %11 = arith.truncf %10 : vector<2x16x128xf32> to vector<2x16x128xbf16>
    %cst_14 = arith.constant 0.000000e+00 : bf16
    %12 = vector.broadcast %cst_14 : bf16 to vector<2x1x128xbf16>
    %13 = vector.extract_strided_slice %11 {offsets = [0, 1, 0], sizes = [2, 15, 128], strides = [1, 1, 1]} : vector<2x16x128xbf16> to vector<2x15x128xbf16>
    %14 = tpu.concatenate %13, %12 in 1 : vector<2x15x128xbf16>, vector<2x1x128xbf16> -> vector<2x16x128xbf16>
    %cst_15 = arith.constant 0.000000e+00 : bf16
    %15 = vector.broadcast %cst_15 : bf16 to vector<2x1x128xbf16>
    %16 = vector.extract_strided_slice %11 {offsets = [0, 0, 0], sizes = [2, 15, 128], strides = [1, 1, 1]} : vector<2x16x128xbf16> to vector<2x15x128xbf16>
    %17 = tpu.concatenate %15, %16 in 1 : vector<2x1x128xbf16>, vector<2x15x128xbf16> -> vector<2x16x128xbf16>
    %18 = tpu.concatenate %17, %11, %14 in 2 : vector<2x16x128xbf16>, vector<2x16x128xbf16>, vector<2x16x128xbf16> -> vector<2x16x384xbf16>
    %19 = vector.shape_cast %18 : vector<2x16x384xbf16> to vector<32x384xbf16>
    %c0_16 = arith.constant 0 : index
    %c0_17 = arith.constant 0 : index
    %20 = vector.load %arg3[%c0_16, %c0_17] : memref<384x128xbf16, #tpu.memory_space<vmem>>, vector<384x128xbf16>
    %cst_18 = arith.constant dense<0.000000e+00> : vector<32x128xf32>
    %21 = tpu.matmul %19, %20, %cst_18 {dimension_numbers = #tpu.dot_dimension_numbers<[1], [0], [0], [1], [0, 0, 1, 1], [], []>} : vector<32x384xbf16>, vector<384x128xbf16>, vector<32x128xf32> -> vector<32x128xf32>
    %22 = vector.shape_cast %21 : vector<32x128xf32> to vector<2x16x128xf32>
    %23 = vector.broadcast %2 : vector<1x1x128xf32> to vector<2x16x128xf32>
    %24 = arith.mulf %22, %23 : vector<2x16x128xf32>
    %25 = vector.broadcast %3 : vector<1x1x128xf32> to vector<2x16x128xf32>
    %26 = arith.addf %24, %25 : vector<2x16x128xf32>
    %cst_19 = arith.constant 0.000000e+00 : f32
    %27 = vector.broadcast %cst_19 : f32 to vector<2x16x128xf32>
    %28 = arith.maximumf %26, %27 : vector<2x16x128xf32>
    %29 = arith.truncf %28 : vector<2x16x128xf32> to vector<2x16x128xbf16>
    %cst_20 = arith.constant 0.000000e+00 : bf16
    %30 = vector.broadcast %cst_20 : bf16 to vector<2x1x128xbf16>
    %31 = vector.extract_strided_slice %29 {offsets = [0, 1, 0], sizes = [2, 15, 128], strides = [1, 1, 1]} : vector<2x16x128xbf16> to vector<2x15x128xbf16>
    %32 = tpu.concatenate %31, %30 in 1 : vector<2x15x128xbf16>, vector<2x1x128xbf16> -> vector<2x16x128xbf16>
    %cst_21 = arith.constant 0.000000e+00 : bf16
    %33 = vector.broadcast %cst_21 : bf16 to vector<2x1x128xbf16>
    %34 = vector.extract_strided_slice %29 {offsets = [0, 0, 0], sizes = [2, 15, 128], strides = [1, 1, 1]} : vector<2x16x128xbf16> to vector<2x15x128xbf16>
    %35 = tpu.concatenate %33, %34 in 1 : vector<2x1x128xbf16>, vector<2x15x128xbf16> -> vector<2x16x128xbf16>
    %36 = tpu.concatenate %35, %29, %32 in 2 : vector<2x16x128xbf16>, vector<2x16x128xbf16>, vector<2x16x128xbf16> -> vector<2x16x384xbf16>
    %37 = vector.shape_cast %36 : vector<2x16x384xbf16> to vector<32x384xbf16>
    %c0_22 = arith.constant 0 : index
    %c0_23 = arith.constant 0 : index
    %38 = vector.load %arg6[%c0_22, %c0_23] : memref<384x128xbf16, #tpu.memory_space<vmem>>, vector<384x128xbf16>
    %cst_24 = arith.constant dense<0.000000e+00> : vector<32x128xf32>
    %39 = tpu.matmul %37, %38, %cst_24 {dimension_numbers = #tpu.dot_dimension_numbers<[1], [0], [0], [1], [0, 0, 1, 1], [], []>} : vector<32x384xbf16>, vector<384x128xbf16>, vector<32x128xf32> -> vector<32x128xf32>
    %40 = vector.shape_cast %4 : vector<2x16x128xf32> to vector<32x128xf32>
    %41 = arith.addf %39, %40 : vector<32x128xf32>
    %42 = vector.shape_cast %41 : vector<32x128xf32> to vector<2x16x128xf32>
    %c0_25 = arith.constant 0 : index
    %c0_26 = arith.constant 0 : index
    %c0_27 = arith.constant 0 : index
    %43 = vector.load %arg7[%c0_25, %c0_26, %c0_27] : memref<2x16x128xf32, #tpu.memory_space<vmem>>, vector<2x16x128xf32>
    tpu.vector_store %arg7[%c0_25, %c0_26, %c0_27], %42 {strides = array<i32>} : memref<2x16x128xf32, #tpu.memory_space<vmem>>, vector<2x16x128xf32>,
    return
  }
}

</mosaic_0001>

<llo_original>
// kernel: preact_block_forward.1
$region0: #{preact_block_forward.1}
  #allocation0 [shape = 'u32[]', space=smem, size = 0x4, offset = 0x4, fixed_abs, tag = 'smem constant byte address 0x4 - core index']
  #allocation1 [shape = 'u32[144,128]{1,0:T(1,128)}', space=vmem, size = 0x12000, scoped, tag = 'internal scratch']
  %s0 = inlined_call_operand.vmem [shape: f32[2,16,128], index: 0, kind: input, shape index: {}]
  %s1 = inlined_call_operand.vmem [shape: f32[1,1,128], index: 1, kind: input, shape index: {}]
  %s2 = inlined_call_operand.vmem [shape: f32[1,1,128], index: 2, kind: input, shape index: {}]
  %s3 = inlined_call_operand.vmem [shape: bf16[384,128], index: 3, kind: input, shape index: {}]
  %s4 = inlined_call_operand.vmem [shape: f32[1,1,128], index: 4, kind: input, shape index: {}]
  %s5 = inlined_call_operand.vmem [shape: f32[1,1,128], index: 5, kind: input, shape index: {}]
  %s6 = inlined_call_operand.vmem [shape: bf16[384,128], index: 6, kind: input, shape index: {}]
  %s7 = inlined_call_operand.vmem [shape: f32[2,16,128], index: 7, kind: output, shape index: {}]
  %s8 = sld [smem:[#allocation0]]
  $region38: #{preact_block_forward.1} parent=0
    _
  %s10 = ssub.s32 1, %s8
  %s11 = scalar_select 0, %s10, %s8
  // Predicated region
  $region2: #{preact_block_forward.1} parent=0 // pred_check
    _
  $region3: #{preact_block_forward.1} parent=0 // pred_check_branch
    %13 = sbr.rel (0) target = $region5
  $region4: #{preact_block_forward.1} parent=0 // pred_region
    _
  $region5: #{preact_block_forward.1} parent=0 // pred_fallthru
    _
  // Predicated region
  $region6: #{preact_block_forward.1} parent=0 // pred_check
    _
  $region7: #{preact_block_forward.1} parent=0 // pred_check_branch
    %15 = sbr.rel (0) target = $region9
  $region8: #{preact_block_forward.1} parent=0 // pred_region
    _
  $region9: #{preact_block_forward.1} parent=0 // pred_fallthru
    _
  // Predicated region
  $region10: #{preact_block_forward.1} parent=0 // pred_check
    _
  $region11: #{preact_block_forward.1} parent=0 // pred_check_branch
    %17 = sbr.rel (0) target = $region13
  $region12: #{preact_block_forward.1} parent=0 // pred_region
    _
  $region13: #{preact_block_forward.1} parent=0 // pred_fallthru
    _
  // Predicated region
  $region14: #{preact_block_forward.1} parent=0 // pred_check
    _
  $region15: #{preact_block_forward.1} parent=0 // pred_check_branch
    %19 = sbr.rel (0) target = $region17
  $region16: #{preact_block_forward.1} parent=0 // pred_region
    _
  $region17: #{preact_block_forward.1} parent=0 // pred_fallthru
    _
  // Predicated region
  $region18: #{preact_block_forward.1} parent=0 // pred_check
    _
  $region19: #{preact_block_forward.1} parent=0 // pred_check_branch
    %21 = sbr.rel (0) target = $region21
  $region20: #{preact_block_forward.1} parent=0 // pred_region
    _
  $region21: #{preact_block_forward.1} parent=0 // pred_fallthru
    _
  // Predicated region
  $region22: #{preact_block_forward.1} parent=0 // pred_check
    _
  $region23: #{preact_block_forward.1} parent=0 // pred_check_branch
    %23 = sbr.rel (0) target = $region25
  $region24: #{preact_block_forward.1} parent=0 // pred_region
    _
  $region25: #{preact_block_forward.1} parent=0 // pred_fallthru
    _
  // Predicated region
  $region26: #{preact_block_forward.1} parent=0 // pred_check
    _
  $region27: #{preact_block_forward.1} parent=0 // pred_check_branch
    %25 = sbr.rel (0) target = $region29
  $region28: #{preact_block_forward.1} parent=0 // pred_region
    _
  $region29: #{preact_block_forward.1} parent=0 // pred_fallthru
    _
  %v27 = vld [vmem:[%s1] sm:$0x1]
  %v28 = vld [vmem:[%s2] sm:$0x1]
  %v29 = vld [vmem:[%s4] sm:$0x1]
  %v30 = vld [vmem:[%s5] sm:$0x1]
  %v31 = vld [vmem:[%s0] sm:$0xff]
  %v32 = vld [vmem:[%s0 + $0x8] sm:$0xff]
  %v33 = vld [vmem:[%s0 + $0x10] sm:$0xff]
  %v34 = vld [vmem:[%s0 + $0x18] sm:$0xff]
  %v36 = vlaneseq
  %v37 = vshrl.u32 %v36, 7
  %v38 = vsub.s32 0, %v37
  %v39 = vrot.slane %v27, %v38
  %v41 = vmul.f32 %v31, %v39
  %v42 = vmul.f32 %v32, %v39
  %v43 = vmul.f32 %v33, %v39
  %v44 = vmul.f32 %v34, %v39
  %v46 = vlaneseq
  %v47 = vshrl.u32 %v46, 7
  %v48 = vsub.s32 0, %v47
  %v49 = vrot.slane %v28, %v48
  %v51 = vadd.f32 %v41, %v49
  %v52 = vadd.f32 %v42, %v49
  %v53 = vadd.f32 %v43, %v49
  %v54 = vadd.f32 %v44, %v49
  %v55 = vmax.f32 %v51, 0.0
  %v56 = vmax.f32 %v52, 0.0
  %v57 = vmax.f32 %v53, 0.0
  %v58 = vmax.f32 %v54, 0.0
  %v59 = vpack.c.bf16 %v56, %v55
  %v60 = vpack.c.bf16 %v58, %v57
  %v62 = vshrl.u32 %v59, 16
  %v64 = vshll.u32 %v59, 16
  %v66 = vrot.slane %v64, 1
  %v67 = vor.u32 %v62, %v66
  %v69 = vshrl.u32 %v60, 16
  %v71 = vshll.u32 %v60, 16
  %v73 = vrot.slane %v71, 1
  %v74 = vor.u32 %v69, %v73
  %vm77 = vcmask 1047552
  %vm78 = vsmask.f32 7424
  %vm79 = vmand %vm77, %vm78
  %v80 = vsel %vm79, %v67, 0
  %v81 = vsel %vm79, %v74, 0
  %v82 = vrot.slane %v62, 7
  %v83 = vor.u32 %v82, %v64
  %v84 = vrot.slane %v69, 7
  %v85 = vor.u32 %v84, %v71
  %vm88 = vcmask 1040384
  %vm89 = vsmask.f32 256
  %vm90 = vmand %vm88, %vm89
  %v91 = vsel %vm90, 0, %v83
  %v92 = vsel %vm90, 0, %v85
  %v93 = vld [vmem:[%s3] sm:$0xf]
  %v94 = vld [vmem:[%s3 + $0x4] sm:$0xf]
  %v95 = vld [vmem:[%s3 + $0x8] sm:$0xf]
  %v96 = vld [vmem:[%s3 + $0xc] sm:$0xf]
  %v97 = vld [vmem:[%s3 + $0x10] sm:$0xf]
  %v98 = vld [vmem:[%s3 + $0x14] sm:$0xf]
  %v99 = vld [vmem:[%s3 + $0x18] sm:$0xf]
  %v100 = vld [vmem:[%s3 + $0x1c] sm:$0xf]
  %v101 = vld [vmem:[%s3 + $0x20] sm:$0xf]
  %v102 = vld [vmem:[%s3 + $0x24] sm:$0xf]
  %v103 = vld [vmem:[%s3 + $0x28] sm:$0xf]
  %v104 = vld [vmem:[%s3 + $0x2c] sm:$0xf]
  %v105 = vld [vmem:[%s3 + $0x30] sm:$0xf]
  %v106 = vld [vmem:[%s3 + $0x34] sm:$0xf]
  %v107 = vld [vmem:[%s3 + $0x38] sm:$0xf]
  %v108 = vld [vmem:[%s3 + $0x3c] sm:$0xf]
  %v109 = vld [vmem:[%s3 + $0x40] sm:$0xf]
  %v110 = vld [vmem:[%s3 + $0x44] sm:$0xf]
  %v111 = vld [vmem:[%s3 + $0x48] sm:$0xf]
  %v112 = vld [vmem:[%s3 + $0x4c] sm:$0xf]
  %v113 = vld [vmem:[%s3 + $0x50] sm:$0xf]
  %v114 = vld [vmem:[%s3 + $0x54] sm:$0xf]
  %v115 = vld [vmem:[%s3 + $0x58] sm:$0xf]
  %v116 = vld [vmem:[%s3 + $0x5c] sm:$0xf]
  %v117 = vld [vmem:[%s3 + $0x60] sm:$0xf]
  %v118 = vld [vmem:[%s3 + $0x64] sm:$0xf]
  %v119 = vld [vmem:[%s3 + $0x68] sm:$0xf]
  %v120 = vld [vmem:[%s3 + $0x6c] sm:$0xf]
  %v121 = vld [vmem:[%s3 + $0x70] sm:$0xf]
  %v122 = vld [vmem:[%s3 + $0x74] sm:$0xf]
  %v123 = vld [vmem:[%s3 + $0x78] sm:$0xf]
  %v124 = vld [vmem:[%s3 + $0x7c] sm:$0xf]
  %v125 = vld [vmem:[%s3 + $0x80] sm:$0xf]
  %v126 = vld [vmem:[%s3 + $0x84] sm:$0xf]
  %v127 = vld [vmem:[%s3 + $0x88] sm:$0xf]
  %v128 = vld [vmem:[%s3 + $0x8c] sm:$0xf]
  %v129 = vld [vmem:[%s3 + $0x90] sm:$0xf]
  %v130 = vld [vmem:[%s3 + $0x94] sm:$0xf]
  %v131 = vld [vmem:[%s3 + $0x98] sm:$0xf]
  %v132 = vld [vmem:[%s3 + $0x9c] sm:$0xf]
  %v133 = vld [vmem:[%s3 + $0xa0] sm:$0xf]
  %v134 = vld [vmem:[%s3 + $0xa4] sm:$0xf]
  %v135 = vld [vmem:[%s3 + $0xa8] sm:$0xf]
  %v136 = vld [vmem:[%s3 + $0xac] sm:$0xf]
  %v137 = vld [vmem:[%s3 + $0xb0] sm:$0xf]
  %v138 = vld [vmem:[%s3 + $0xb4] sm:$0xf]
  %v139 = vld [vmem:[%s3 + $0xb8] sm:$0xf]
  %v140 = vld [vmem:[%s3 + $0xbc] sm:$0xf]
  %v189 = vunpack.c.l.b16 %v93
  %v190 = vunpack.c.l.b16 %v94
  %v191 = vunpack.c.l.b16 %v95
  %v192 = vunpack.c.l.b16 %v96
  %v193 = vunpack.c.l.b16 %v97
  %v194 = vunpack.c.l.b16 %v98
  %v195 = vunpack.c.l.b16 %v99
  %v196 = vunpack.c.l.b16 %v100
  %v197 = vunpack.c.l.b16 %v101
  %v198 = vunpack.c.l.b16 %v102
  %v199 = vunpack.c.l.b16 %v103
  %v200 = vunpack.c.l.b16 %v104
  %v201 = vunpack.c.l.b16 %v105
  %v202 = vunpack.c.l.b16 %v106
  %v203 = vunpack.c.l.b16 %v107
  %v204 = vunpack.c.l.b16 %v108
  %v205 = vunpack.c.l.b16 %v109
  %v206 = vunpack.c.l.b16 %v110
  %v207 = vunpack.c.l.b16 %v111
  %v208 = vunpack.c.l.b16 %v112
  %v209 = vunpack.c.l.b16 %v113
  %v210 = vunpack.c.l.b16 %v114
  %v211 = vunpack.c.l.b16 %v115
  %v212 = vunpack.c.l.b16 %v116
  %v213 = vunpack.c.l.b16 %v117
  %v214 = vunpack.c.l.b16 %v118
  %v215 = vunpack.c.l.b16 %v119
  %v216 = vunpack.c.l.b16 %v120
  %v217 = vunpack.c.l.b16 %v121
  %v218 = vunpack.c.l.b16 %v122
  %v219 = vunpack.c.l.b16 %v123
  %v220 = vunpack.c.l.b16 %v124
  %v221 = vunpack.c.l.b16 %v125
  %v222 = vunpack.c.l.b16 %v126
  %v223 = vunpack.c.l.b16 %v127
  %v224 = vunpack.c.l.b16 %v128
  %v225 = vunpack.c.l.b16 %v129
  %v226 = vunpack.c.l.b16 %v130
  %v227 = vunpack.c.l.b16 %v131
  %v228 = vunpack.c.l.b16 %v132
  %v229 = vunpack.c.l.b16 %v133
  %v230 = vunpack.c.l.b16 %v134
  %v231 = vunpack.c.l.b16 %v135
  %v232 = vunpack.c.l.b16 %v136
  %v233 = vunpack.c.l.b16 %v137
  %v234 = vunpack.c.l.b16 %v138
  %v235 = vunpack.c.l.b16 %v139
  %v236 = vunpack.c.l.b16 %v140
  %v237 = vpack.c.b16 %v190, %v189
  %v238 = vpack.c.b16 %v192, %v191
  %v239 = vpack.c.b16 %v194, %v193
  %v240 = vpack.c.b16 %v196, %v195
  %v241 = vpack.c.b16 %v198, %v197
  %v242 = vpack.c.b16 %v200, %v199
  %v243 = vpack.c.b16 %v202, %v201
  %v244 = vpack.c.b16 %v204, %v203
  %v245 = vpack.c.b16 %v206, %v205
  %v246 = vpack.c.b16 %v208, %v207
  %v247 = vpack.c.b16 %v210, %v209
  %v248 = vpack.c.b16 %v212, %v211
  %v249 = vpack.c.b16 %v214, %v213
  %v250 = vpack.c.b16 %v216, %v215
  %v251 = vpack.c.b16 %v218, %v217
  %v252 = vpack.c.b16 %v220, %v219
  %v253 = vpack.c.b16 %v222, %v221
  %v254 = vpack.c.b16 %v224, %v223
  %v255 = vpack.c.b16 %v226, %v225
  %v256 = vpack.c.b16 %v228, %v227
  %v257 = vpack.c.b16 %v230, %v229
  %v258 = vpack.c.b16 %v232, %v231
  %v259 = vpack.c.b16 %v234, %v233
  %v260 = vpack.c.b16 %v236, %v235
  %285 = vmatprep.subr.bf16.mxu0 0
  %286 = vmatpush1.bf16.msra.mxu0 %v237
  %287 = vmatprep.subr.bf16.mxu0 0
  %288 = vmatpush1.bf16.msra.mxu0 %v238
  %289 = vmatprep.subr.bf16.mxu0 0
  %290 = vmatpush1.bf16.msra.mxu0 %v239
  %291 = vmatprep.subr.bf16.mxu0 0
  %292 = vmatpush1.bf16.msra.mxu0 %v240
  %293 = vmatprep.subr.bf16.mxu0 0
  %294 = vmatpush1.bf16.msra.mxu0 %v241
  %295 = vmatprep.subr.bf16.mxu0 0
  %296 = vmatpush1.bf16.msra.mxu0 %v242
  %297 = vmatprep.subr.bf16.mxu0 0
  %298 = vmatpush1.bf16.msra.mxu0 %v243
  %299 = vmatprep.subr.bf16.mxu0 0
  %300 = vmatpush1.bf16.msra.mxu0 %v244
  %301 = vmatprep.subr.bf16.mxu0 0
  %302 = vmatpush1.bf16.msra.mxu0 %v245
  %303 = vmatprep.subr.bf16.mxu0 0
  %304 = vmatpush1.bf16.msra.mxu0 %v246
  %305 = vmatprep.subr.bf16.mxu0 0
  %306 = vmatpush1.bf16.msra.mxu0 %v247
  %307 = vmatprep.subr.bf16.mxu0 0
  %308 = vmatpush1.bf16.msra.mxu0 %v248
  %309 = vmatprep.subr.bf16.mxu0 0
  %310 = vmatpush1.bf16.msra.mxu0 %v249
  %311 = vmatprep.subr.bf16.mxu0 0
  %312 = vmatpush1.bf16.msra.mxu0 %v250
  %313 = vmatprep.subr.bf16.mxu0 0
  %314 = vmatpush1.bf16.msra.mxu0 %v251
  %315 = vmatprep.subr.bf16.mxu0 0
  %316 = vmatpush1.bf16.msra.mxu0 %v252
  %317 = vmatprep.mubr.bf16.mxu0 %v59
  %318 = vmatmul.mubr.bf16.gmra.mrb[0].mxu0 %v91
  %v319 = vpop.f32.mrb[0].mxu0
  %v320 = vadd.f32 0.0, %v319
  %v321 = vpop.f32.mrb[0].mxu0
  %v322 = vpop.f32.mrb[0].mxu0
  %v323 = vadd.f32 0.0, %v322
  %v324 = vpop.f32.mrb[0].mxu0
  %325 = vmatprep.mubr.bf16.mxu0 %v60
  %326 = vmatmul.mubr.bf16.gmra.mrb[0].mxu0 %v92
  %v327 = vpop.f32.mrb[0].mxu0
  %v328 = vadd.f32 0.0, %v327
  %v329 = vpop.f32.mrb[0].mxu0
  %v330 = vpop.f32.mrb[0].mxu0
  %v331 = vadd.f32 0.0, %v330
  %v332 = vpop.f32.mrb[0].mxu0
  %333 = vdwg.mxu0
  %334 = vmatprep.subr.bf16.mxu0 0
  %335 = vmatpush1.bf16.msra.mxu0 %v253
  %336 = vmatprep.subr.bf16.mxu0 0
  %337 = vmatpush1.bf16.msra.mxu0 %v254
  %338 = vmatprep.subr.bf16.mxu0 0
  %339 = vmatpush1.bf16.msra.mxu0 %v255
  %340 = vmatprep.subr.bf16.mxu0 0
  %341 = vmatpush1.bf16.msra.mxu0 %v256
  %342 = vmatprep.subr.bf16.mxu0 0
  %343 = vmatpush1.bf16.msra.mxu0 %v257
  %344 = vmatprep.subr.bf16.mxu0 0
  %345 = vmatpush1.bf16.msra.mxu0 %v258
  %346 = vmatprep.subr.bf16.mxu0 0
  %347 = vmatpush1.bf16.msra.mxu0 %v259
  %348 = vmatprep.subr.bf16.mxu0 0
  %349 = vmatpush1.bf16.msra.mxu0 %v260
  %350 = vmatprep.subr.bf16.mxu0 0
  %351 = vmatpush1.bf16.msra.mxu0 0
  %352 = vmatprep.subr.bf16.mxu0 0
  %353 = vmatpush1.bf16.msra.mxu0 0
  %354 = vmatprep.subr.bf16.mxu0 0
  %355 = vmatpush1.bf16.msra.mxu0 0
  %356 = vmatprep.subr.bf16.mxu0 0
  %357 = vmatpush1.bf16.msra.mxu0 0
  %358 = vmatprep.subr.bf16.mxu0 0
  %359 = vmatpush1.bf16.msra.mxu0 0
  %360 = vmatprep.subr.bf16.mxu0 0
  %361 = vmatpush1.bf16.msra.mxu0 0
  %362 = vmatprep.subr.bf16.mxu0 0
  %363 = vmatpush1.bf16.msra.mxu0 0
  %364 = vmatprep.subr.bf16.mxu0 0
  %365 = vmatpush1.bf16.msra.mxu0 0
  %366 = vmatprep.mubr.bf16.mxu0 0
  %367 = vmatmul.mubr.bf16.gmra.mrb[0].mxu0 %v80
  %v368 = vpop.f32.mrb[0].mxu0
  %v369 = vadd.f32 %v320, %v368
  %v370 = vpop.f32.mrb[0].mxu0
  %v371 = vpop.f32.mrb[0].mxu0
  %v372 = vadd.f32 %v323, %v371
  %v373 = vpop.f32.mrb[0].mxu0
  %374 = vmatprep.mubr.bf16.mxu0 0
  %375 = vmatmul.mubr.bf16.gmra.mrb[0].mxu0 %v81
  %v376 = vpop.f32.mrb[0].mxu0
  %v377 = vadd.f32 %v328, %v376
  %v378 = vpop.f32.mrb[0].mxu0
  %v379 = vpop.f32.mrb[0].mxu0
  %v380 = vadd.f32 %v331, %v379
  %v381 = vpop.f32.mrb[0].mxu0
  %382 = vdwg.mxu0
  %v384 = vlaneseq
  %v385 = vshrl.u32 %v384, 7
  %v386 = vsub.s32 0, %v385
  %v387 = vrot.slane %v29, %v386
  %v389 = vmul.f32 %v369, %v387
  %v390 = vmul.f32 %v372, %v387
  %v391 = vmul.f32 %v377, %v387
  %v392 = vmul.f32 %v380, %v387
  %v394 = vlaneseq
  %v395 = vshrl.u32 %v394, 7
  %v396 = vsub.s32 0, %v395
  %v397 = vrot.slane %v30, %v396
  %v399 = vadd.f32 %v389, %v397
  %v400 = vadd.f32 %v390, %v397
  %v401 = vadd.f32 %v391, %v397
  %v402 = vadd.f32 %v392, %v397
  %v403 = vmax.f32 %v399, 0.0
  %v404 = vmax.f32 %v400, 0.0
  %v405 = vmax.f32 %v401, 0.0
  %v406 = vmax.f32 %v402, 0.0
  %v407 = vpack.c.bf16 %v404, %v403
  %v408 = vpack.c.bf16 %v406, %v405
  %v410 = vshrl.u32 %v407, 16
  %v412 = vshll.u32 %v407, 16
  %v414 = vrot.slane %v412, 1
  %v415 = vor.u32 %v410, %v414
  %v417 = vshrl.u32 %v408, 16
  %v419 = vshll.u32 %v408, 16
  %v421 = vrot.slane %v419, 1
  %v422 = vor.u32 %v417, %v421
  %v425 = vsel %vm79, %v415, 0
  %v426 = vsel %vm79, %v422, 0
  %v427 = vrot.slane %v410, 7
  %v428 = vor.u32 %v427, %v412
  %v429 = vrot.slane %v417, 7
  %v430 = vor.u32 %v429, %v419
  %v433 = vsel %vm90, 0, %v428
  %v434 = vsel %vm90, 0, %v430
  %v435 = vld [vmem:[%s6] sm:$0xf]
  %v436 = vld [vmem:[%s6 + $0x4] sm:$0xf]
  %v437 = vld [vmem:[%s6 + $0x8] sm:$0xf]
  %v438 = vld [vmem:[%s6 + $0xc] sm:$0xf]
  %v439 = vld [vmem:[%s6 + $0x10] sm:$0xf]
  %v440 = vld [vmem:[%s6 + $0x14] sm:$0xf]
  %v441 = vld [vmem:[%s6 + $0x18] sm:$0xf]
  %v442 = vld [vmem:[%s6 + $0x1c] sm:$0xf]
  %v443 = vld [vmem:[%s6 + $0x20] sm:$0xf]
  %v444 = vld [vmem:[%s6 + $0x24] sm:$0xf]
  %v445 = vld [vmem:[%s6 + $0x28] sm:$0xf]
  %v446 = vld [vmem:[%s6 + $0x2c] sm:$0xf]
  %v447 = vld [vmem:[%s6 + $0x30] sm:$0xf]
  %v448 = vld [vmem:[%s6 + $0x34] sm:$0xf]
  %v449 = vld [vmem:[%s6 + $0x38] sm:$0xf]
  %v450 = vld [vmem:[%s6 + $0x3c] sm:$0xf]
  %v451 = vld [vmem:[%s6 + $0x40] sm:$0xf]
  %v452 = vld [vmem:[%s6 + $0x44] sm:$0xf]
  %v453 = vld [vmem:[%s6 + $0x48] sm:$0xf]
  %v454 = vld [vmem:[%s6 + $0x4c] sm:$0xf]
  %v455 = vld [vmem:[%s6 + $0x50] sm:$0xf]
  %v456 = vld [vmem:[%s6 + $0x54] sm:$0xf]
  %v457 = vld [vmem:[%s6 + $0x58] sm:$0xf]
  %v458 = vld [vmem:[%s6 + $0x5c] sm:$0xf]
  %v459 = vld [vmem:[%s6 + $0x60] sm:$0xf]
  %v460 = vld [vmem:[%s6 + $0x64] sm:$0xf]
  %v461 = vld [vmem:[%s6 + $0x68] sm:$0xf]
  %v462 = vld [vmem:[%s6 + $0x6c] sm:$0xf]
  %v463 = vld [vmem:[%s6 + $0x70] sm:$0xf]
  %v464 = vld [vmem:[%s6 + $0x74] sm:$0xf]
  %v465 = vld [vmem:[%s6 + $0x78] sm:$0xf]
  %v466 = vld [vmem:[%s6 + $0x7c] sm:$0xf]
  %v467 = vld [vmem:[%s6 + $0x80] sm:$0xf]
  %v468 = vld [vmem:[%s6 + $0x84] sm:$0xf]
  %v469 = vld [vmem:[%s6 + $0x88] sm:$0xf]
  %v470 = vld [vmem:[%s6 + $0x8c] sm:$0xf]
  %v471 = vld [vmem:[%s6 + $0x90] sm:$0xf]
  %v472 = vld [vmem:[%s6 + $0x94] sm:$0xf]
  %v473 = vld [vmem:[%s6 + $0x98] sm:$0xf]
  %v474 = vld [vmem:[%s6 + $0x9c] sm:$0xf]
  %v475 = vld [vmem:[%s6 + $0xa0] sm:$0xf]
  %v476 = vld [vmem:[%s6 + $0xa4] sm:$0xf]
  %v477 = vld [vmem:[%s6 + $0xa8] sm:$0xf]
  %v478 = vld [vmem:[%s6 + $0xac] sm:$0xf]
  %v479 = vld [vmem:[%s6 + $0xb0] sm:$0xf]
  %v480 = vld [vmem:[%s6 + $0xb4] sm:$0xf]
  %v481 = vld [vmem:[%s6 + $0xb8] sm:$0xf]
  %v482 = vld [vmem:[%s6 + $0xbc] sm:$0xf]
  %v531 = vunpack.c.l.b16 %v435
  %v532 = vunpack.c.l.b16 %v436
  %v533 = vunpack.c.l.b16 %v437
  %v534 = vunpack.c.l.b16 %v438
  %v535 = vunpack.c.l.b16 %v439
  %v536 = vunpack.c.l.b16 %v440
  %v537 = vunpack.c.l.b16 %v441
  %v538 = vunpack.c.l.b16 %v442
  %v539 = vunpack.c.l.b16 %v443
  %v540 = vunpack.c.l.b16 %v444
  %v541 = vunpack.c.l.b16 %v445
  %v542 = vunpack.c.l.b16 %v446
  %v543 = vunpack.c.l.b16 %v447
  %v544 = vunpack.c.l.b16 %v448
  %v545 = vunpack.c.l.b16 %v449
  %v546 = vunpack.c.l.b16 %v450
  %v547 = vunpack.c.l.b16 %v451
  %v548 = vunpack.c.l.b16 %v452
  %v549 = vunpack.c.l.b16 %v453
  %v550 = vunpack.c.l.b16 %v454
  %v551 = vunpack.c.l.b16 %v455
  %v552 = vunpack.c.l.b16 %v456
  %v553 = vunpack.c.l.b16 %v457
  %v554 = vunpack.c.l.b16 %v458
  %v555 = vunpack.c.l.b16 %v459
  %v556 = vunpack.c.l.b16 %v460
  %v557 = vunpack.c.l.b16 %v461
  %v558 = vunpack.c.l.b16 %v462
  %v559 = vunpack.c.l.b16 %v463
  %v560 = vunpack.c.l.b16 %v464
  %v561 = vunpack.c.l.b16 %v465
  %v562 = vunpack.c.l.b16 %v466
  %v563 = vunpack.c.l.b16 %v467
  %v564 = vunpack.c.l.b16 %v468
  %v565 = vunpack.c.l.b16 %v469
  %v566 = vunpack.c.l.b16 %v470
  %v567 = vunpack.c.l.b16 %v471
  %v568 = vunpack.c.l.b16 %v472
  %v569 = vunpack.c.l.b16 %v473
  %v570 = vunpack.c.l.b16 %v474
  %v571 = vunpack.c.l.b16 %v475
  %v572 = vunpack.c.l.b16 %v476
  %v573 = vunpack.c.l.b16 %v477
  %v574 = vunpack.c.l.b16 %v478
  %v575 = vunpack.c.l.b16 %v479
  %v576 = vunpack.c.l.b16 %v480
  %v577 = vunpack.c.l.b16 %v481
  %v578 = vunpack.c.l.b16 %v482
  %v579 = vpack.c.b16 %v532, %v531
  %v580 = vpack.c.b16 %v534, %v533
  %v581 = vpack.c.b16 %v536, %v535
  %v582 = vpack.c.b16 %v538, %v537
  %v583 = vpack.c.b16 %v540, %v539
  %v584 = vpack.c.b16 %v542, %v541
  %v585 = vpack.c.b16 %v544, %v543
  %v586 = vpack.c.b16 %v546, %v545
  %v587 = vpack.c.b16 %v548, %v547
  %v588 = vpack.c.b16 %v550, %v549
  %v589 = vpack.c.b16 %v552, %v551
  %v590 = vpack.c.b16 %v554, %v553
  %v591 = vpack.c.b16 %v556, %v555
  %v592 = vpack.c.b16 %v558, %v557
  %v593 = vpack.c.b16 %v560, %v559
  %v594 = vpack.c.b16 %v562, %v561
  %v595 = vpack.c.b16 %v564, %v563
  %v596 = vpack.c.b16 %v566, %v565
  %v597 = vpack.c.b16 %v568, %v567
  %v598 = vpack.c.b16 %v570, %v569
  %v599 = vpack.c.b16 %v572, %v571
  %v600 = vpack.c.b16 %v574, %v573
  %v601 = vpack.c.b16 %v576, %v575
  %v602 = vpack.c.b16 %v578, %v577
  %627 = vmatprep.subr.bf16.mxu0 0
  %628 = vmatpush1.bf16.msra.mxu0 %v579
  %629 = vmatprep.subr.bf16.mxu0 0
  %630 = vmatpush1.bf16.msra.mxu0 %v580
  %631 = vmatprep.subr.bf16.mxu0 0
  %632 = vmatpush1.bf16.msra.mxu0 %v581
  %633 = vmatprep.subr.bf16.mxu0 0
  %634 = vmatpush1.bf16.msra.mxu0 %v582
  %635 = vmatprep.subr.bf16.mxu0 0
  %636 = vmatpush1.bf16.msra.mxu0 %v583
  %637 = vmatprep.subr.bf16.mxu0 0
  %638 = vmatpush1.bf16.msra.mxu0 %v584
  %639 = vmatprep.subr.bf16.mxu0 0
  %640 = vmatpush1.bf16.msra.mxu0 %v585
  %641 = vmatprep.subr.bf16.mxu0 0
  %642 = vmatpush1.bf16.msra.mxu0 %v586
  %643 = vmatprep.subr.bf16.mxu0 0
  %644 = vmatpush1.bf16.msra.mxu0 %v587
  %645 = vmatprep.subr.bf16.mxu0 0
  %646 = vmatpush1.bf16.msra.mxu0 %v588
  %647 = vmatprep.subr.bf16.mxu0 0
  %648 = vmatpush1.bf16.msra.mxu0 %v589
  %649 = vmatprep.subr.bf16.mxu0 0
  %650 = vmatpush1.bf16.msra.mxu0 %v590
  %651 = vmatprep.subr.bf16.mxu0 0
  %652 = vmatpush1.bf16.msra.mxu0 %v591
  %653 = vmatprep.subr.bf16.mxu0 0
  %654 = vmatpush1.bf16.msra.mxu0 %v592
  %655 = vmatprep.subr.bf16.mxu0 0
  %656 = vmatpush1.bf16.msra.mxu0 %v593
  %657 = vmatprep.subr.bf16.mxu0 0
  %658 = vmatpush1.bf16.msra.mxu0 %v594
  %659 = vmatprep.mubr.bf16.mxu0 %v407
  %660 = vmatmul.mubr.bf16.gmra.mrb[0].mxu0 %v433
  %v661 = vpop.f32.mrb[0].mxu0
  %v662 = vadd.f32 %v31, %v661
  %v663 = vpop.f32.mrb[0].mxu0
  %v664 = vpop.f32.mrb[0].mxu0
  %v665 = vadd.f32 %v32, %v664
  %v666 = vpop.f32.mrb[0].mxu0
  %667 = vmatprep.mubr.bf16.mxu0 %v408
  %668 = vmatmul.mubr.bf16.gmra.mrb[0].mxu0 %v434
  %v669 = vpop.f32.mrb[0].mxu0
  %v670 = vadd.f32 %v33, %v669
  %v671 = vpop.f32.mrb[0].mxu0
  %v672 = vpop.f32.mrb[0].mxu0
  %v673 = vadd.f32 %v34, %v672
  %v674 = vpop.f32.mrb[0].mxu0
  %675 = vdwg.mxu0
  %676 = vmatprep.subr.bf16.mxu0 0
  %677 = vmatpush1.bf16.msra.mxu0 %v595
  %678 = vmatprep.subr.bf16.mxu0 0
  %679 = vmatpush1.bf16.msra.mxu0 %v596
  %680 = vmatprep.subr.bf16.mxu0 0
  %681 = vmatpush1.bf16.msra.mxu0 %v597
  %682 = vmatprep.subr.bf16.mxu0 0
  %683 = vmatpush1.bf16.msra.mxu0 %v598
  %684 = vmatprep.subr.bf16.mxu0 0
  %685 = vmatpush1.bf16.msra.mxu0 %v599
  %686 = vmatprep.subr.bf16.mxu0 0
  %687 = vmatpush1.bf16.msra.mxu0 %v600
  %688 = vmatprep.subr.bf16.mxu0 0
  %689 = vmatpush1.bf16.msra.mxu0 %v601
  %690 = vmatprep.subr.bf16.mxu0 0
  %691 = vmatpush1.bf16.msra.mxu0 %v602
  %692 = vmatprep.subr.bf16.mxu0 0
  %693 = vmatpush1.bf16.msra.mxu0 0
  %694 = vmatprep.subr.bf16.mxu0 0
  %695 = vmatpush1.bf16.msra.mxu0 0
  %696 = vmatprep.subr.bf16.mxu0 0
  %697 = vmatpush1.bf16.msra.mxu0 0
  %698 = vmatprep.subr.bf16.mxu0 0
  %699 = vmatpush1.bf16.msra.mxu0 0
  %700 = vmatprep.subr.bf16.mxu0 0
  %701 = vmatpush1.bf16.msra.mxu0 0
  %702 = vmatprep.subr.bf16.mxu0 0
  %703 = vmatpush1.bf16.msra.mxu0 0
  %704 = vmatprep.subr.bf16.mxu0 0
  %705 = vmatpush1.bf16.msra.mxu0 0
  %706 = vmatprep.subr.bf16.mxu0 0
  %707 = vmatpush1.bf16.msra.mxu0 0
  %708 = vmatprep.mubr.bf16.mxu0 0
  %709 = vmatmul.mubr.bf16.gmra.mrb[0].mxu0 %v425
  %v710 = vpop.f32.mrb[0].mxu0
  %v711 = vadd.f32 %v662, %v710
  %v712 = vpop.f32.mrb[0].mxu0
  %v713 = vpop.f32.mrb[0].mxu0
  %v714 = vadd.f32 %v665, %v713
  %v715 = vpop.f32.mrb[0].mxu0
  %716 = vmatprep.mubr.bf16.mxu0 0
  %717 = vmatmul.mubr.bf16.gmra.mrb[0].mxu0 %v426
  %v718 = vpop.f32.mrb[0].mxu0
  %v719 = vadd.f32 %v670, %v718
  %v720 = vpop.f32.mrb[0].mxu0
  %v721 = vpop.f32.mrb[0].mxu0
  %v722 = vadd.f32 %v673, %v721
  %v723 = vpop.f32.mrb[0].mxu0
  %724 = vdwg.mxu0
  %725 = vst [vmem:[%s7] sm:$0xff] %v711
  %726 = vst [vmem:[%s7 + $0x8] sm:$0xff] %v714
  %727 = vst [vmem:[%s7 + $0x10] sm:$0xff] %v719
  %728 = vst [vmem:[%s7 + $0x18] sm:$0xff] %v722
  // Predicated region
  $region30: #{preact_block_forward.1} parent=0 // pred_check
    _
  $region31: #{preact_block_forward.1} parent=0 // pred_check_branch
    %730 = sbr.rel (0) target = $region33
  $region32: #{preact_block_forward.1} parent=0 // pred_region
    _
  $region33: #{preact_block_forward.1} parent=0 // pred_fallthru
    _
  // Predicated region
  $region34: #{preact_block_forward.1} parent=0 // pred_check
    _
  $region35: #{preact_block_forward.1} parent=0 // pred_check_branch
    %732 = sbr.rel (0) target = $region37
  $region36: #{preact_block_forward.1} parent=0 // pred_region
    _
  $region37: #{preact_block_forward.1} parent=0 // pred_fallthru
    _

</llo_original>
